<compile_context>
chip_gen: v6e
topology: v6e:2x2x1
jax: 0.10.0
libtpu: 0.0.40
codegen_flags: <defaults>
</compile_context>

<pallas_src>
import math
from functools import partial

import jax
import jax.numpy as jnp
from jax.experimental import pallas as pl
from jax.experimental.pallas import tpu as pltpu


# -----------------------------------------------------------------------------
# Generation-aware VMEM budget
# -----------------------------------------------------------------------------

def _vmem_limit_bytes():
    """~60% of physical VMEM, capped at 64 MiB: ~64 MiB on v5e/v6e (128 MiB),
    ~38 MiB on v7x (64 MiB). Leaves headroom for compiler scratch/spill."""
    try:
        info = pltpu.get_tpu_info()
        cap = int(getattr(info, "vmem_capacity_bytes", 0))
        if cap > 0:
            return min(int(cap * 0.6), 64 * 1024 * 1024)
    except Exception:
        pass
    return 48 * 1024 * 1024  # conservative fallback, safe on all generations


# -----------------------------------------------------------------------------
# RoPE tables (hoisted; built once, passed into the kernel)
# -----------------------------------------------------------------------------

def make_rope_tables(seq_len, d_model, dtype=jnp.float32):
    half = d_model // 2
    inv_freq = 1.0 / (10000.0 ** (jnp.arange(half, dtype=jnp.float32) / half))
    pos = jnp.arange(seq_len, dtype=jnp.float32)
    ang = pos[:, None] * inv_freq[None, :]          # (S, D/2)
    ang = jnp.concatenate([ang, ang], axis=-1)      # (S, D)
    return jnp.cos(ang).astype(dtype), jnp.sin(ang).astype(dtype)


def fold_rope_sign(sin):
    """Fold the rotate-half sign into the sin table:
       rot(x) = concat([-x2, x1]) = roll(x, D/2) * [-1...-1, +1...+1]."""
    _, D = sin.shape
    half = D // 2
    sign = jnp.concatenate([-jnp.ones((half,), sin.dtype),
                            jnp.ones((half,), sin.dtype)])
    return sin * sign[None, :]


# -----------------------------------------------------------------------------
# Kernel 1: fused Q/K/V projections (bf16 MXU, fp32 accum) + RoPE epilogue
# -----------------------------------------------------------------------------

def _qkv_rope_kernel(q_ref, k_ref, v_ref, wq_ref, wk_ref, wv_ref,
                     cos_ref, sin_ref,
                     rq_ref, rk_ref, rv_ref,
                     accq, acck, accv):
    ki = pl.program_id(2)

    @pl.when(ki == 0)
    def _init():
        accq[...] = jnp.zeros_like(accq)
        acck[...] = jnp.zeros_like(acck)
        accv[...] = jnp.zeros_like(accv)

    # bf16 MXU operands, fp32 accumulation.
    xq = q_ref[0].astype(jnp.bfloat16)
    xk = k_ref[0].astype(jnp.bfloat16)
    xv = v_ref[0].astype(jnp.bfloat16)
    accq[...] += jnp.dot(xq, wq_ref[...], preferred_element_type=jnp.float32)
    acck[...] += jnp.dot(xk, wk_ref[...], preferred_element_type=jnp.float32)
    accv[...] += jnp.dot(xv, wv_ref[...], preferred_element_type=jnp.float32)

    @pl.when(ki == pl.num_programs(2) - 1)
    def _finalize():
        cos = cos_ref[...]          # (ts, D) fp32
        sin = sin_ref[...]          # (ts, D) fp32, rotate-half sign folded in
        half = cos.shape[-1] // 2

        def rope(acc_ref):          # fp32 elementwise (v5e has no bf16 VPU)
            x = acc_ref[...]
            rot = pltpu.roll(x, shift=half, axis=x.ndim - 1)   # XLU slot
            return x * cos + rot * sin

        rq_ref[0] = rope(accq).astype(rq_ref.dtype)
        rk_ref[0] = rope(acck).astype(rk_ref.dtype)
        rv_ref[0] = rope(accv).astype(rv_ref.dtype)


def fused_qkv_rope(q, k, v, Wq, Wk, Wv, cos, sin_signed, *, ts=512, tk=None):
    B, S, D = q.shape
    vmem = _vmem_limit_bytes()
    ts = min(ts, S)
    if tk is None:
        # Keep all three bf16 weight matrices fully VMEM-resident (constant
        # block index -> single DMA each) whenever they fit comfortably;
        # otherwise tile the contraction dim.
        tk = D if 3 * D * D * 2 <= vmem // 3 else min(512, D)
    tk = min(tk, D)
    assert S % ts == 0 and D % tk == 0
    grid = (B, S // ts, D // tk)                     # reduction axis last

    wq = Wq.astype(jnp.bfloat16)
    wk = Wk.astype(jnp.bfloat16)
    wv = Wv.astype(jnp.bfloat16)

    x_spec = pl.BlockSpec((1, ts, tk), lambda b, si, ki: (b, si, ki))
    w_spec = pl.BlockSpec((tk, D), lambda b, si, ki: (ki, 0))
    t_spec = pl.BlockSpec((ts, D), lambda b, si, ki: (si, 0))
    o_spec = pl.BlockSpec((1, ts, D), lambda b, si, ki: (b, si, 0))
    # bf16 intermediates: halves HBM write + re-read between the two kernels.
    out_sds = jax.ShapeDtypeStruct((B, S, D), jnp.bfloat16)

    weight_passes = 1 if tk == D else B * (S // ts)
    cost = pl.CostEstimate(
        flops=int(3 * 2 * B * S * D * D),
        transcendentals=0,
        bytes_accessed=int(3 * B * S * D * 4
                           + 3 * D * D * 2 * weight_passes
                           + 2 * S * D * 4
                           + 3 * B * S * D * 2))

    return pl.pallas_call(
        _qkv_rope_kernel,
        grid=grid,
        in_specs=[x_spec, x_spec, x_spec, w_spec, w_spec, w_spec, t_spec, t_spec],
        out_specs=[o_spec, o_spec, o_spec],
        out_shape=(out_sds, out_sds, out_sds),
        scratch_shapes=[pltpu.VMEM((ts, D), jnp.float32),
                        pltpu.VMEM((ts, D), jnp.float32),
                        pltpu.VMEM((ts, D), jnp.float32)],
        cost_estimate=cost,
        compiler_params=pltpu.CompilerParams(
            dimension_semantics=("parallel", "parallel", "arbitrary"),
            vmem_limit_bytes=vmem),
    )(q, k, v, wq, wk, wv, cos, sin_signed)


# -----------------------------------------------------------------------------
# Kernel 2: flash-style SDPA (online softmax over KV tiles) + fused Wo matmul
# -----------------------------------------------------------------------------

def _flash_sdpa_proj_kernel(q_ref, k_ref, v_ref, wo_ref, o_ref,
                            m_ref, l_ref, acc_ref, *, heads_num, scale):
    kv = pl.program_id(2)

    @pl.when(kv == 0)
    def _init():
        m_ref[...] = jnp.full(m_ref.shape, -jnp.inf, dtype=m_ref.dtype)
        l_ref[...] = jnp.zeros_like(l_ref)
        acc_ref[...] = jnp.zeros_like(acc_ref)

    q = q_ref[0] * scale            # (tq, D) bf16; scale q, not the SxS scores
    k = k_ref[0]                    # (tkv, D) bf16
    v = v_ref[0]                    # (tkv, D) bf16
    D = q.shape[-1]
    dk = D // heads_num

    # Online softmax per head; each head's partial output streams directly
    # into its lane slice of the merged-head (tq, D) accumulator — no concat,
    # no H simultaneously-live head outputs.
    for h in range(heads_num):      # static unrolled loop over heads
        sl = slice(h * dk, (h + 1) * dk)
        s = jax.lax.dot_general(q[:, sl], k[:, sl], (((1,), (1,)), ((), ())),
                                preferred_element_type=jnp.float32)  # (tq, tkv)
        m_prev = m_ref[h]                                   # (tq, 1)
        m_new = jnp.maximum(m_prev, jnp.max(s, axis=-1, keepdims=True))
        alpha = jnp.exp(m_prev - m_new)
        p = jnp.exp(s - m_new)
        l_ref[h] = alpha * l_ref[h] + jnp.sum(p, axis=-1, keepdims=True)
        pv = jnp.dot(p.astype(jnp.bfloat16), v[:, sl],
                     preferred_element_type=jnp.float32)
        acc_ref[:, sl] = alpha * acc_ref[:, sl] + pv
        m_ref[h] = m_new

    @pl.when(kv == pl.num_programs(2) - 1)
    def _finalize():
        # Normalize in place (per-head denominator), then one lane-dense
        # merged-head tile feeds the fused output projection.
        for h in range(heads_num):
            sl = slice(h * dk, (h + 1) * dk)
            acc_ref[:, sl] = acc_ref[:, sl] * pl.reciprocal(l_ref[h], approx=True)
        z = acc_ref[...].astype(jnp.bfloat16)               # (tq, D)
        o_ref[0] = jnp.dot(z, wo_ref[...],
                           preferred_element_type=jnp.float32).astype(o_ref.dtype)


def flash_sdpa_proj(rq, rk, rv, Wo, heads_num, *, tq=256, tkv=512):
    B, S, D = rq.shape
    d_k = D // heads_num
    scale = 1.0 / math.sqrt(d_k)
    vmem = _vmem_limit_bytes()
    tq = min(tq, S)
    tkv = min(tkv, S)
    assert S % tq == 0 and S % tkv == 0
    grid = (B, S // tq, S // tkv)                    # KV (reduction) axis last

    wo = Wo.astype(jnp.bfloat16)

    q_spec = pl.BlockSpec((1, tq, D), lambda b, qi, kv: (b, qi, 0))
    kv_spec = pl.BlockSpec((1, tkv, D), lambda b, qi, kv: (b, kv, 0))
    wo_spec = pl.BlockSpec((D, D), lambda b, qi, kv: (0, 0))   # VMEM-resident
    o_spec = pl.BlockSpec((1, tq, D), lambda b, qi, kv: (b, qi, 0))

    cost = pl.CostEstimate(
        flops=int(4 * B * S * S * D + 2 * B * S * D * D),
        transcendentals=int(B * heads_num * S * S),
        bytes_accessed=int(3 * B * S * D * 2 + D * D * 2 + B * S * D * 4))

    return pl.pallas_call(
        partial(_flash_sdpa_proj_kernel, heads_num=heads_num, scale=scale),
        grid=grid,
        in_specs=[q_spec, kv_spec, kv_spec, wo_spec],
        out_specs=o_spec,
        out_shape=jax.ShapeDtypeStruct((B, S, D), jnp.float32),
        scratch_shapes=[pltpu.VMEM((heads_num, tq, 1), jnp.float32),   # m
                        pltpu.VMEM((heads_num, tq, 1), jnp.float32),   # l
                        pltpu.VMEM((tq, D), jnp.float32)],             # acc
        cost_estimate=cost,
        compiler_params=pltpu.CompilerParams(
            dimension_semantics=("parallel", "parallel", "arbitrary"),
            vmem_limit_bytes=vmem),
    )(rq, rk, rv, wo)


# -----------------------------------------------------------------------------
# MultiHeadAttention forward
# -----------------------------------------------------------------------------

def multi_head_attention(queries, keys, values, params, heads_num,
                         cos, sin_signed, mask=None):
    """queries/keys/values: (B, S, d_model) -> (B, S, d_model)."""
    assert mask is None  # TODO(synk): mask handling not specified in reference

    # Kernel 1: fused projections + RoPE (bf16 intermediates out)
    rq, rk, rv = fused_qkv_rope(queries, keys, values,
                                params["Wq"], params["Wk"], params["Wv"],
                                cos, sin_signed)

    # Kernel 2: flash SDPA over all heads + fused output projection
    return flash_sdpa_proj(rq, rk, rv, params["Wo"], heads_num)


# -----------------------------------------------------------------------------
# Deterministic parameter init (xavier_uniform, square d_model x d_model)
# -----------------------------------------------------------------------------

def xavier_uniform(key, fan_in, fan_out, dtype=jnp.float32):
    bound = math.sqrt(6.0 / (fan_in + fan_out))
    return jax.random.uniform(key, (fan_in, fan_out), dtype,
                              minval=-bound, maxval=bound)


# -----------------------------------------------------------------------------
# Pure-JAX fp32 reference for verification
# -----------------------------------------------------------------------------

def reference_mha(q, k, v, params, heads_num):
    B, S, D = q.shape
    d_k = D // heads_num
    cos, sin = make_rope_tables(S, D, q.dtype)

    def rope(x):
        x1, x2 = x[..., : D // 2], x[..., D // 2:]
        rot = jnp.concatenate([-x2, x1], axis=-1)
        return x * cos[None] + rot * sin[None]

    wq = rope(q @ params["Wq"])
    wk = rope(k @ params["Wk"])
    wv = rope(v @ params["Wv"])

    def split(x):
        return x.reshape(B, S, heads_num, d_k).transpose(0, 2, 1, 3)

    qh, kh, vh = split(wq), split(wk), split(wv)
    scores = jnp.einsum("bhqd,bhkd->bhqk", qh, kh) / math.sqrt(d_k)
    p = jax.nn.softmax(scores, axis=-1)
    attn = jnp.einsum("bhqk,bhkd->bhqd", p, vh)
    z = attn.transpose(0, 2, 1, 3).reshape(B, S, D)
    return z @ params["Wo"]


# -----------------------------------------------------------------------------
# Main
# -----------------------------------------------------------------------------

if __name__ == "__main__":
    # small but TPU-friendly shapes: d_model = 128 (lane-dense), 4 heads -> d_k=32
    B, S, D, H = 2, 8, 128, 4

    key = jax.random.PRNGKey(0)
    kq, kk, kv, k1, k2, k3, k4 = jax.random.split(key, 7)

    queries = jax.random.normal(kq, (B, S, D), jnp.float32)
    keys = jax.random.normal(kk, (B, S, D), jnp.float32)
    values = jax.random.normal(kv, (B, S, D), jnp.float32)

    params = {
        "Wq": xavier_uniform(k1, D, D),
        "Wk": xavier_uniform(k2, D, D),
        "Wv": xavier_uniform(k3, D, D),
        "Wo": xavier_uniform(k4, D, D),
    }

    # hoist positional-encoding tables (built once, passed into the kernel)
    cos, sin = make_rope_tables(S, D, jnp.float32)
    sin_signed = fold_rope_sign(sin)

    out = multi_head_attention(queries, keys, values, params, H,
                               cos, sin_signed, mask=None)
    out = jax.block_until_ready(out)

    ref = reference_mha(queries, keys, values, params, H)
    assert out.shape == (B, S, D)
    # tolerance covers bf16 MXU operands (fp32 accumulation), bf16 rq/rk/rv
    # intermediates, and the approximate EUP reciprocal in the softmax.
    assert jnp.allclose(out, ref, atol=5e-2, rtol=5e-2), "mismatch vs reference"

    print("KERNEL_OK")
</pallas_src>

<mosaic_0001>
module attributes {stable_mosaic.version = 11 : i64} {
  func.func @_qkv_rope_kernel(%arg0: i32, %arg1: i32, %arg2: i32, %arg3: memref<1x8x128xf32, #tpu.memory_space<vmem>>, %arg4: memref<1x8x128xf32, #tpu.memory_space<vmem>>, %arg5: memref<1x8x128xf32, #tpu.memory_space<vmem>>, %arg6: memref<128x128xbf16, #tpu.memory_space<vmem>>, %arg7: memref<128x128xbf16, #tpu.memory_space<vmem>>, %arg8: memref<128x128xbf16, #tpu.memory_space<vmem>>, %arg9: memref<8x128xf32, #tpu.memory_space<vmem>>, %arg10: memref<8x128xf32, #tpu.memory_space<vmem>>, %arg11: memref<1x8x128xbf16, #tpu.memory_space<vmem>>, %arg12: memref<1x8x128xbf16, #tpu.memory_space<vmem>>, %arg13: memref<1x8x128xbf16, #tpu.memory_space<vmem>>, %arg14: memref<8x128xf32, #tpu.memory_space<vmem>>, %arg15: memref<8x128xf32, #tpu.memory_space<vmem>>, %arg16: memref<8x128xf32, #tpu.memory_space<vmem>>) attributes {dimension_semantics = [#tpu.dimension_semantics<parallel>, #tpu.dimension_semantics<parallel>, #tpu.dimension_semantics<arbitrary>], iteration_bounds = array<i64: 2, 1, 1>, scalar_prefetch = 0 : i64, scratch_operands = 3 : i64, tpu.core_type = #tpu.core_type<tc>, window_params = [{transform_indices = @transform_0, window_bounds = array<i64: 1, 8, 128>}, {transform_indices = @transform_1, window_bounds = array<i64: 1, 8, 128>}, {transform_indices = @transform_2, window_bounds = array<i64: 1, 8, 128>}, {transform_indices = @transform_3, window_bounds = array<i64: 128, 128>}, {transform_indices = @transform_4, window_bounds = array<i64: 128, 128>}, {transform_indices = @transform_5, window_bounds = array<i64: 128, 128>}, {transform_indices = @transform_6, window_bounds = array<i64: 8, 128>}, {transform_indices = @transform_7, window_bounds = array<i64: 8, 128>}, {transform_indices = @transform_8, window_bounds = array<i64: 1, 8, 128>}, {transform_indices = @transform_9, window_bounds = array<i64: 1, 8, 128>}, {transform_indices = @transform_10, window_bounds = array<i64: 1, 8, 128>}]} {
    %c0_i32 = arith.constant 0 : i32
    %0 = arith.cmpi eq, %arg2, %c0_i32 : i32
    %1 = arith.extui %0 : i1 to i32
    %c0_i32_0 = arith.constant 0 : i32
    %2 = arith.cmpi ne, %1, %c0_i32_0 : i32
    scf.if %2 {
      %cst_31 = arith.constant 0.000000e+00 : f32
      %30 = vector.broadcast %cst_31 : f32 to vector<8x128xf32>
      %c0_32 = arith.constant 0 : index
      %c0_33 = arith.constant 0 : index
      %31 = vector.load %arg14[%c0_32, %c0_33] : memref<8x128xf32, #tpu.memory_space<vmem>>, vector<8x128xf32>
      tpu.vector_store %arg14[%c0_32, %c0_33], %30 {strides = array<i32>} : memref<8x128xf32, #tpu.memory_space<vmem>>, vector<8x128xf32>,
      %cst_34 = arith.constant 0.000000e+00 : f32
      %32 = vector.broadcast %cst_34 : f32 to vector<8x128xf32>
      %c0_35 = arith.constant 0 : index
      %c0_36 = arith.constant 0 : index
      %33 = vector.load %arg15[%c0_35, %c0_36] : memref<8x128xf32, #tpu.memory_space<vmem>>, vector<8x128xf32>
      tpu.vector_store %arg15[%c0_35, %c0_36], %32 {strides = array<i32>} : memref<8x128xf32, #tpu.memory_space<vmem>>, vector<8x128xf32>,
      %cst_37 = arith.constant 0.000000e+00 : f32
      %34 = vector.broadcast %cst_37 : f32 to vector<8x128xf32>
      %c0_38 = arith.constant 0 : index
      %c0_39 = arith.constant 0 : index
      %35 = vector.load %arg16[%c0_38, %c0_39] : memref<8x128xf32, #tpu.memory_space<vmem>>, vector<8x128xf32>
      tpu.vector_store %arg16[%c0_38, %c0_39], %34 {strides = array<i32>} : memref<8x128xf32, #tpu.memory_space<vmem>>, vector<8x128xf32>,
    } else {
    }
    %c0 = arith.constant 0 : index
    %c0_1 = arith.constant 0 : index
    %c0_2 = arith.constant 0 : index
    %3 = vector.load %arg3[%c0, %c0_1, %c0_2] : memref<1x8x128xf32, #tpu.memory_space<vmem>>, vector<1x8x128xf32>
    %4 = vector.shape_cast %3 : vector<1x8x128xf32> to vector<8x128xf32>
    %5 = arith.truncf %4 : vector<8x128xf32> to vector<8x128xbf16>
    %c0_3 = arith.constant 0 : index
    %c0_4 = arith.constant 0 : index
    %c0_5 = arith.constant 0 : index
    %6 = vector.load %arg4[%c0_3, %c0_4, %c0_5] : memref<1x8x128xf32, #tpu.memory_space<vmem>>, vector<1x8x128xf32>
    %7 = vector.shape_cast %6 : vector<1x8x128xf32> to vector<8x128xf32>
    %8 = arith.truncf %7 : vector<8x128xf32> to vector<8x128xbf16>
    %c0_6 = arith.constant 0 : index
    %c0_7 = arith.constant 0 : index
    %c0_8 = arith.constant 0 : index
    %9 = vector.load %arg5[%c0_6, %c0_7, %c0_8] : memref<1x8x128xf32, #tpu.memory_space<vmem>>, vector<1x8x128xf32>
    %10 = vector.shape_cast %9 : vector<1x8x128xf32> to vector<8x128xf32>
    %11 = arith.truncf %10 : vector<8x128xf32> to vector<8x128xbf16>
    %c0_9 = arith.constant 0 : index
    %c0_10 = arith.constant 0 : index
    %12 = vector.load %arg14[%c0_9, %c0_10] : memref<8x128xf32, #tpu.memory_space<vmem>>, vector<8x128xf32>
    %c0_11 = arith.constant 0 : index
    %c0_12 = arith.constant 0 : index
    %13 = vector.load %arg6[%c0_11, %c0_12] : memref<128x128xbf16, #tpu.memory_space<vmem>>, vector<128x128xbf16>
    %cst = arith.constant dense<0.000000e+00> : vector<8x128xf32>
    %14 = tpu.matmul %5, %13, %cst {dimension_numbers = #tpu.dot_dimension_numbers<[1], [0], [0], [1], [0, 0, 1, 1], [], []>} : vector<8x128xbf16>, vector<128x128xbf16>, vector<8x128xf32> -> vector<8x128xf32>
    %15 = arith.addf %12, %14 : vector<8x128xf32>
    %c0_13 = arith.constant 0 : index
    %c0_14 = arith.constant 0 : index
    %16 = vector.load %arg14[%c0_13, %c0_14] : memref<8x128xf32, #tpu.memory_space<vmem>>, vector<8x128xf32>
    tpu.vector_store %arg14[%c0_13, %c0_14], %15 {strides = array<i32>} : memref<8x128xf32, #tpu.memory_space<vmem>>, vector<8x128xf32>,
    %c0_15 = arith.constant 0 : index
    %c0_16 = arith.constant 0 : index
    %17 = vector.load %arg15[%c0_15, %c0_16] : memref<8x128xf32, #tpu.memory_space<vmem>>, vector<8x128xf32>
    %c0_17 = arith.constant 0 : index
    %c0_18 = arith.constant 0 : index
    %18 = vector.load %arg7[%c0_17, %c0_18] : memref<128x128xbf16, #tpu.memory_space<vmem>>, vector<128x128xbf16>
    %cst_19 = arith.constant dense<0.000000e+00> : vector<8x128xf32>
    %19 = tpu.matmul %8, %18, %cst_19 {dimension_numbers = #tpu.dot_dimension_numbers<[1], [0], [0], [1], [0, 0, 1, 1], [], []>} : vector<8x128xbf16>, vector<128x128xbf16>, vector<8x128xf32> -> vector<8x128xf32>
    %20 = arith.addf %17, %19 : vector<8x128xf32>
    %c0_20 = arith.constant 0 : index
    %c0_21 = arith.constant 0 : index
    %21 = vector.load %arg15[%c0_20, %c0_21] : memref<8x128xf32, #tpu.memory_space<vmem>>, vector<8x128xf32>
    tpu.vector_store %arg15[%c0_20, %c0_21], %20 {strides = array<i32>} : memref<8x128xf32, #tpu.memory_space<vmem>>, vector<8x128xf32>,
    %c0_22 = arith.constant 0 : index
    %c0_23 = arith.constant 0 : index
    %22 = vector.load %arg16[%c0_22, %c0_23] : memref<8x128xf32, #tpu.memory_space<vmem>>, vector<8x128xf32>
    %c0_24 = arith.constant 0 : index
    %c0_25 = arith.constant 0 : index
    %23 = vector.load %arg8[%c0_24, %c0_25] : memref<128x128xbf16, #tpu.memory_space<vmem>>, vector<128x128xbf16>
    %cst_26 = arith.constant dense<0.000000e+00> : vector<8x128xf32>
    %24 = tpu.matmul %11, %23, %cst_26 {dimension_numbers = #tpu.dot_dimension_numbers<[1], [0], [0], [1], [0, 0, 1, 1], [], []>} : vector<8x128xbf16>, vector<128x128xbf16>, vector<8x128xf32> -> vector<8x128xf32>
    %25 = arith.addf %22, %24 : vector<8x128xf32>
    %c0_27 = arith.constant 0 : index
    %c0_28 = arith.constant 0 : index
    %26 = vector.load %arg16[%c0_27, %c0_28] : memref<8x128xf32, #tpu.memory_space<vmem>>, vector<8x128xf32>
    tpu.vector_store %arg16[%c0_27, %c0_28], %25 {strides = array<i32>} : memref<8x128xf32, #tpu.memory_space<vmem>>, vector<8x128xf32>,
    %c0_i32_29 = arith.constant 0 : i32
    %27 = arith.cmpi eq, %arg2, %c0_i32_29 : i32
    %28 = arith.extui %27 : i1 to i32
    %c0_i32_30 = arith.constant 0 : i32
    %29 = arith.cmpi ne, %28, %c0_i32_30 : i32
    scf.if %29 {
      %c0_31 = arith.constant 0 : index
      %c0_32 = arith.constant 0 : index
      %30 = vector.load %arg9[%c0_31, %c0_32] : memref<8x128xf32, #tpu.memory_space<vmem>>, vector<8x128xf32>
      %c0_33 = arith.constant 0 : index
      %c0_34 = arith.constant 0 : index
      %31 = vector.load %arg10[%c0_33, %c0_34] : memref<8x128xf32, #tpu.memory_space<vmem>>, vector<8x128xf32>
      %c0_35 = arith.constant 0 : index
      %c0_36 = arith.constant 0 : index
      %32 = vector.load %arg14[%c0_35, %c0_36] : memref<8x128xf32, #tpu.memory_space<vmem>>, vector<8x128xf32>
      %c64_i32 = arith.constant 64 : i32
      %33 = tpu.dynamic_rotate %32 by %c64_i32 dim 1 : vector<8x128xf32>, i32 -> vector<8x128xf32>
      %34 = arith.mulf %32, %30 : vector<8x128xf32>
      %35 = arith.mulf %33, %31 : vector<8x128xf32>
      %36 = arith.addf %34, %35 : vector<8x128xf32>
      %37 = arith.truncf %36 : vector<8x128xf32> to vector<8x128xbf16>
      %c0_37 = arith.constant 0 : index
      %c0_38 = arith.constant 0 : index
      %c0_39 = arith.constant 0 : index
      %38 = vector.load %arg11[%c0_37, %c0_38, %c0_39] : memref<1x8x128xbf16, #tpu.memory_space<vmem>>, vector<1x8x128xbf16>
      %39 = vector.shape_cast %38 : vector<1x8x128xbf16> to vector<8x128xbf16>
      %40 = vector.shape_cast %37 : vector<8x128xbf16> to vector<1x8x128xbf16>
      tpu.vector_store %arg11[%c0_37, %c0_38, %c0_39], %40 {strides = array<i32>} : memref<1x8x128xbf16, #tpu.memory_space<vmem>>, vector<1x8x128xbf16>,
      %c0_40 = arith.constant 0 : index
      %c0_41 = arith.constant 0 : index
      %41 = vector.load %arg15[%c0_40, %c0_41] : memref<8x128xf32, #tpu.memory_space<vmem>>, vector<8x128xf32>
      %c64_i32_42 = arith.constant 64 : i32
      %42 = tpu.dynamic_rotate %41 by %c64_i32_42 dim 1 : vector<8x128xf32>, i32 -> vector<8x128xf32>
      %43 = arith.mulf %41, %30 : vector<8x128xf32>
      %44 = arith.mulf %42, %31 : vector<8x128xf32>
      %45 = arith.addf %43, %44 : vector<8x128xf32>
      %46 = arith.truncf %45 : vector<8x128xf32> to vector<8x128xbf16>
      %c0_43 = arith.constant 0 : index
      %c0_44 = arith.constant 0 : index
      %c0_45 = arith.constant 0 : index
      %47 = vector.load %arg12[%c0_43, %c0_44, %c0_45] : memref<1x8x128xbf16, #tpu.memory_space<vmem>>, vector<1x8x128xbf16>
      %48 = vector.shape_cast %47 : vector<1x8x128xbf16> to vector<8x128xbf16>
      %49 = vector.shape_cast %46 : vector<8x128xbf16> to vector<1x8x128xbf16>
      tpu.vector_store %arg12[%c0_43, %c0_44, %c0_45], %49 {strides = array<i32>} : memref<1x8x128xbf16, #tpu.memory_space<vmem>>, vector<1x8x128xbf16>,
      %c0_46 = arith.constant 0 : index
      %c0_47 = arith.constant 0 : index
      %50 = vector.load %arg16[%c0_46, %c0_47] : memref<8x128xf32, #tpu.memory_space<vmem>>, vector<8x128xf32>
      %c64_i32_48 = arith.constant 64 : i32
      %51 = tpu.dynamic_rotate %50 by %c64_i32_48 dim 1 : vector<8x128xf32>, i32 -> vector<8x128xf32>
      %52 = arith.mulf %50, %30 : vector<8x128xf32>
      %53 = arith.mulf %51, %31 : vector<8x128xf32>
      %54 = arith.addf %52, %53 : vector<8x128xf32>
      %55 = arith.truncf %54 : vector<8x128xf32> to vector<8x128xbf16>
      %c0_49 = arith.constant 0 : index
      %c0_50 = arith.constant 0 : index
      %c0_51 = arith.constant 0 : index
      %56 = vector.load %arg13[%c0_49, %c0_50, %c0_51] : memref<1x8x128xbf16, #tpu.memory_space<vmem>>, vector<1x8x128xbf16>
      %57 = vector.shape_cast %56 : vector<1x8x128xbf16> to vector<8x128xbf16>
      %58 = vector.shape_cast %55 : vector<8x128xbf16> to vector<1x8x128xbf16>
      tpu.vector_store %arg13[%c0_49, %c0_50, %c0_51], %58 {strides = array<i32>} : memref<1x8x128xbf16, #tpu.memory_space<vmem>>, vector<1x8x128xbf16>,
    } else {
    }
    return
  }
  func.func @transform_0(%arg0: i32, %arg1: i32, %arg2: i32) -> (i32, i32, i32) {
    %c0_i32 = arith.constant 0 : i32
    return %arg0, %arg1, %arg2 : i32, i32, i32
  }
  func.func @transform_1(%arg0: i32, %arg1: i32, %arg2: i32) -> (i32, i32, i32) {
    %c0_i32 = arith.constant 0 : i32
    return %arg0, %arg1, %arg2 : i32, i32, i32
  }
  func.func @transform_2(%arg0: i32, %arg1: i32, %arg2: i32) -> (i32, i32, i32) {
    %c0_i32 = arith.constant 0 : i32
    return %arg0, %arg1, %arg2 : i32, i32, i32
  }
  func.func @transform_3(%arg0: i32, %arg1: i32, %arg2: i32) -> (i32, i32) {
    %c0_i32 = arith.constant 0 : i32
    %c0_i32_0 = arith.constant 0 : i32
    return %arg2, %c0_i32 : i32, i32
  }
  func.func @transform_4(%arg0: i32, %arg1: i32, %arg2: i32) -> (i32, i32) {
    %c0_i32 = arith.constant 0 : i32
    %c0_i32_0 = arith.constant 0 : i32
    return %arg2, %c0_i32 : i32, i32
  }
  func.func @transform_5(%arg0: i32, %arg1: i32, %arg2: i32) -> (i32, i32) {
    %c0_i32 = arith.constant 0 : i32
    %c0_i32_0 = arith.constant 0 : i32
    return %arg2, %c0_i32 : i32, i32
  }
  func.func @transform_6(%arg0: i32, %arg1: i32, %arg2: i32) -> (i32, i32) {
    %c0_i32 = arith.constant 0 : i32
    %c0_i32_0 = arith.constant 0 : i32
    return %arg1, %c0_i32 : i32, i32
  }
  func.func @transform_7(%arg0: i32, %arg1: i32, %arg2: i32) -> (i32, i32) {
    %c0_i32 = arith.constant 0 : i32
    %c0_i32_0 = arith.constant 0 : i32
    return %arg1, %c0_i32 : i32, i32
  }
  func.func @transform_8(%arg0: i32, %arg1: i32, %arg2: i32) -> (i32, i32, i32) {
    %c0_i32 = arith.constant 0 : i32
    %c0_i32_0 = arith.constant 0 : i32
    return %arg0, %arg1, %c0_i32 : i32, i32, i32
  }
  func.func @transform_9(%arg0: i32, %arg1: i32, %arg2: i32) -> (i32, i32, i32) {
    %c0_i32 = arith.constant 0 : i32
    %c0_i32_0 = arith.constant 0 : i32
    return %arg0, %arg1, %c0_i32 : i32, i32, i32
  }
  func.func @transform_10(%arg0: i32, %arg1: i32, %arg2: i32) -> (i32, i32, i32) {
    %c0_i32 = arith.constant 0 : i32
    %c0_i32_0 = arith.constant 0 : i32
    return %arg0, %arg1, %c0_i32 : i32, i32, i32
  }
}

</mosaic_0001>

<llo_original>
// kernel: tpu_custom_call.1
$region0: #{tpu_custom_call.1}
  #allocation0 [shape = 'u32[]', space=smem, size = 0x4, offset = 0x4, fixed_abs, tag = 'smem constant byte address 0x4 - core index']
  #allocation1 [shape = 'u32[144,128]{1,0:T(1,128)}', space=vmem, size = 0x12000, scoped, tag = 'internal scratch']
  #allocation2 [shape = 'f32[8,128]{1,0:T(8,128)}', space=vmem, size = 0x1000, scoped, tag = 'scratch operand']
  #allocation3 [shape = 'f32[8,128]{1,0:T(8,128)}', space=vmem, size = 0x1000, scoped, tag = 'scratch operand']
  #allocation4 [shape = 'f32[8,128]{1,0:T(8,128)}', space=vmem, size = 0x1000, scoped, tag = 'scratch operand']
  %s0 = inlined_call_operand.hbm [shape: f32[2,8,128], index: 0, kind: input, shape index: {}]
  %s1 = inlined_call_operand.hbm [shape: f32[2,8,128], index: 1, kind: input, shape index: {}]
  %s2 = inlined_call_operand.hbm [shape: f32[2,8,128], index: 2, kind: input, shape index: {}]
  %s3 = inlined_call_operand.hbm [shape: bf16[128,128], index: 3, kind: input, shape index: {}]
  %s4 = inlined_call_operand.hbm [shape: bf16[128,128], index: 4, kind: input, shape index: {}]
  %s5 = inlined_call_operand.hbm [shape: bf16[128,128], index: 5, kind: input, shape index: {}]
  %s6 = inlined_call_operand.vmem [shape: f32[8,128], index: 6, kind: input, shape index: {}]
  %s7 = inlined_call_operand.hbm [shape: f32[8,128], index: 7, kind: input, shape index: {}]
  %s8 = inlined_call_operand.hbm [shape: bf16[2,8,128], index: 8, kind: output, shape index: {0}]
  %s9 = inlined_call_operand.hbm [shape: bf16[2,8,128], index: 9, kind: output, shape index: {1}]
  %s10 = inlined_call_operand.hbm [shape: bf16[2,8,128], index: 10, kind: output, shape index: {2}]
  %11 = xla_tuple %s8, %s9, %s10
  %s12 = sld [smem:[#allocation0]]
  $region117: #{tpu_custom_call.1} parent=0
    _
  %s14 = ssub.s32 1, %s12
  %s15 = scalar_select 0, %s14, %s12
  $region1: #{tpu_custom_call.1} parent=0
    #allocation5 [shape = 'u8[8192]{0}', space=vmem, size = 0x2000, scoped, tag = 'input window, operand 0']
    #allocation6 [shape = 's32[2]{0}', space=sflag, size = 0x8, scoped, tag = 'scoped memory for tpu_custom_call.1']
    #allocation7 [shape = 's32[2]{0}', space=sflag, size = 0x8, scoped, tag = 'scoped memory for tpu_custom_call.1']
    #allocation8 [shape = 'u8[8192]{0}', space=vmem, size = 0x2000, scoped, tag = 'input window, operand 1']
    #allocation9 [shape = 's32[2]{0}', space=sflag, size = 0x8, scoped, tag = 'scoped memory for tpu_custom_call.1']
    #allocation10 [shape = 'u8[8192]{0}', space=vmem, size = 0x2000, scoped, tag = 'input window, operand 2']
    #allocation11 [shape = 'u8[32768]{0}', space=vmem, size = 0x8000, scoped, tag = 'input window, operand 3, single buffered']
    #allocation12 [shape = 's32[1]{0}', space=sflag, size = 0x4, scoped, tag = 'scoped memory for tpu_custom_call.1']
    #allocation13 [shape = 'u8[32768]{0}', space=vmem, size = 0x8000, scoped, tag = 'input window, operand 4, single buffered']
    #allocation14 [shape = 'u8[32768]{0}', space=vmem, size = 0x8000, scoped, tag = 'input window, operand 5, single buffered']
    #allocation15 [shape = 's32[1]{0}', space=sflag, size = 0x4, scoped, tag = 'scoped memory for tpu_custom_call.1']
    #allocation16 [shape = 'u8[4096]{0}', space=vmem, size = 0x1000, scoped, tag = 'input window, operand 7, single buffered']
    #allocation17 [shape = 'u8[4096]{0}', space=vmem, size = 0x1000, scoped, tag = 'output window, operand 0']
    #allocation18 [shape = 'u8[4096]{0}', space=vmem, size = 0x1000, scoped, tag = 'output window, operand 1']
    #allocation19 [shape = 's32[2]{0}', space=sflag, size = 0x8, scoped, tag = 'scoped memory for tpu_custom_call.1']
    #allocation20 [shape = 'u8[4096]{0}', space=vmem, size = 0x1000, scoped, tag = 'output window, operand 2']
    %16 = vsyncpa [#allocation6], 0
    %s17 = scalar_lea.sflag [#allocation6], 1
    %18 = vsyncpa %s17, 0
    %19 = vsyncpa [#allocation9], 0
    %s20 = scalar_lea.sflag [#allocation9], 1
    %21 = vsyncpa %s20, 0
    %22 = vsyncpa [#allocation12], 0
    %23 = vsyncpa [#allocation15], 0
    %24 = vsyncpa [#allocation7], 0
    %s25 = scalar_lea.sflag [#allocation7], 1
    %26 = vsyncpa %s25, 0
    %27 = vsyncpa [#allocation19], 0
    %s28 = scalar_lea.sflag [#allocation19], 1
    %29 = vsyncpa %s28, 0
    loop: start=0, step=1, limit=4
    $region2: #{tpu_custom_call.1} parent=1 // loop_pre_header
      _
    $region3: #{tpu_custom_call.1} parent=1 // loop_header
      %s31 = sphi 0, %s35
      %p32 = scmp.ge.s32.totalorder %s31, 4
      %s38 = sphi 0, %s57
      %s39 = sphi 0, %s53
      %s40 = sphi 0, %s49
      %s41 = sphi 0, %s38
      %s42 = sphi 0, %s39
      %s43 = sphi 0, %s40
      %s44 = sphi 0, %s41
      %s45 = sphi 0, %s42
      %s46 = sphi 0, %s43
      %s64 = sphi 0, %s66
      %s67 = sphi 0, %s64
      %s68 = sphi 0, %s67
      %s84 = sphi 0, %s68
      %s94 = sphi 0, %s96
      %s97 = sphi 0, %s94
      %s98 = sphi 0, %s97
      %s114 = sphi 0, %s98
      %s124 = sphi 0, %s126
      %s127 = sphi 0, %s124
      %s128 = sphi 0, %s127
      %s144 = sphi 0, %s128
      %s150 = sphi 0, %s152
      %s153 = sphi 0, %s150
      %s154 = sphi 0, %s153
      %s170 = sphi 0, %s154
      %s176 = sphi 0, %s178
      %s179 = sphi 0, %s176
      %s180 = sphi 0, %s179
      %s196 = sphi 0, %s180
      %s202 = sphi 0, %s204
      %s205 = sphi 0, %s202
      %s206 = sphi 0, %s205
      %s222 = sphi 0, %s206
      %s228 = sphi 0, %s230
      %s231 = sphi 0, %s228
      %s232 = sphi 0, %s231
      %s248 = sphi 0, %s232
      %s254 = sphi 0, %s256
      %s257 = sphi 0, %s254
      %s258 = sphi 0, %s257
      %s274 = sphi 0, %s258
      %s282 = sphi 0, %s284
      %s285 = sphi 0, %s282
      %s286 = sphi 0, %s285
      %s302 = sphi 0, %s286
      %s310 = sphi 0, %s312
      %s313 = sphi 0, %s310
      %s314 = sphi 0, %s313
      %s330 = sphi 0, %s314
      %s338 = sphi 0, %s340
      %s341 = sphi 0, %s338
      %s342 = sphi 0, %s341
      %s358 = sphi 0, %s342
    $region4: #{tpu_custom_call.1} parent=1 // loop_header_branch
      %34 = sbr.rel (%p32) target = $region8
    $region5: #{tpu_custom_call.1} parent=1 // loop_body
      %s36 = ssub.s32 %s31, 1
      %s37 = ssub.s32 %s31, 2
      %s47 = sadd.s32 1, %s40
      %p48 = scmp.ge.s32.totalorder %s47, 1
      %s49 = scalar_select %p48, 0, %s47
      %s50 = sadd.s32 1, %s39
      %s51 = scalar_select %p48, %s50, %s39
      %p52 = scmp.ge.s32.totalorder %s51, 1
      %s53 = scalar_select %p52, 0, %s51
      %s54 = sadd.s32 1, %s38
      %s55 = scalar_select %p52, %s54, %s38
      %p56 = scmp.ge.s32.totalorder %s55, 2
      %s57 = scalar_select %p56, 0, %s55
      %s58 = ssub.s32 %s38, %s57
      %s59 = ssub.s32 %s39, %s53
      %s60 = sor.u32 %s58, %s59
      %s61 = ssub.s32 %s40, %s49
      %s62 = sor.u32 %s60, %s61
      %p63 = scmp.eq.s32.totalorder %s62, 0
      %s65 = sadd.s32 %s64, 1
      %s66 = scalar_select %p63, %s64, %s65
      %p69 = pneg %p63
      %p70 = scmp.eq.s32.totalorder %s31, 1
      %p71 = por %p69, %p70
      %p72 = scmp.ne.s32.totalorder %s64, %s67
      %p73 = scmp.eq.s32.totalorder %s31, 0
      %p74 = por %p72, %p73
      %p75 = scmp.ne.s32.totalorder %s64, %s67
      %p76 = scmp.eq.s32.totalorder %s36, 1
      %p77 = por %p75, %p76
      %p78 = scmp.ne.s32.totalorder %s67, %s68
      %p79 = scmp.eq.s32.totalorder %s36, 0
      %p80 = por %p78, %p79
      %p81 = scmp.ne.s32.totalorder %s67, %s68
      %p82 = scmp.eq.s32.totalorder %s37, 1
      %p83 = por %p81, %p82
      %p85 = scmp.ne.s32.totalorder %s68, %s84
      %p86 = scmp.eq.s32.totalorder %s37, 0
      %p87 = por %p85, %p86
      %s88 = ssub.s32 %s38, %s57
      %s89 = ssub.s32 %s39, %s53
      %s90 = sor.u32 %s88, %s89
      %s91 = ssub.s32 %s40, %s49
      %s92 = sor.u32 %s90, %s91
      %p93 = scmp.eq.s32.totalorder %s92, 0
      %s95 = sadd.s32 %s94, 1
      %s96 = scalar_select %p93, %s94, %s95
      %p99 = pneg %p93
      %p100 = scmp.eq.s32.totalorder %s31, 1
      %p101 = por %p99, %p100
      %p102 = scmp.ne.s32.totalorder %s94, %s97
      %p103 = scmp.eq.s32.totalorder %s31, 0
      %p104 = por %p102, %p103
      %p105 = scmp.ne.s32.totalorder %s94, %s97
      %p106 = scmp.eq.s32.totalorder %s36, 1
      %p107 = por %p105, %p106
      %p108 = scmp.ne.s32.totalorder %s97, %s98
      %p109 = scmp.eq.s32.totalorder %s36, 0
      %p110 = por %p108, %p109
      %p111 = scmp.ne.s32.totalorder %s97, %s98
      %p112 = scmp.eq.s32.totalorder %s37, 1
      %p113 = por %p111, %p112
      %p115 = scmp.ne.s32.totalorder %s98, %s114
      %p116 = scmp.eq.s32.totalorder %s37, 0
      %p117 = por %p115, %p116
      %s118 = ssub.s32 %s38, %s57
      %s119 = ssub.s32 %s39, %s53
      %s120 = sor.u32 %s118, %s119
      %s121 = ssub.s32 %s40, %s49
      %s122 = sor.u32 %s120, %s121
      %p123 = scmp.eq.s32.totalorder %s122, 0
      %s125 = sadd.s32 %s124, 1
      %s126 = scalar_select %p123, %s124, %s125
      %p129 = pneg %p123
      %p130 = scmp.eq.s32.totalorder %s31, 1
      %p131 = por %p129, %p130
      %p132 = scmp.ne.s32.totalorder %s124, %s127
      %p133 = scmp.eq.s32.totalorder %s31, 0
      %p134 = por %p132, %p133
      %p135 = scmp.ne.s32.totalorder %s124, %s127
      %p136 = scmp.eq.s32.totalorder %s36, 1
      %p137 = por %p135, %p136
      %p138 = scmp.ne.s32.totalorder %s127, %s128
      %p139 = scmp.eq.s32.totalorder %s36, 0
      %p140 = por %p138, %p139
      %p141 = scmp.ne.s32.totalorder %s127, %s128
      %p142 = scmp.eq.s32.totalorder %s37, 1
      %p143 = por %p141, %p142
      %p145 = scmp.ne.s32.totalorder %s128, %s144
      %p146 = scmp.eq.s32.totalorder %s37, 0
      %p147 = por %p145, %p146
      %s148 = ssub.s32 %s40, %s49
      %p149 = scmp.eq.s32.totalorder %s148, 0
      %s151 = sadd.s32 %s150, 1
      %s152 = scalar_select %p149, %s150, %s151
      %p155 = pneg %p149
      %p156 = scmp.eq.s32.totalorder %s31, 1
      %p157 = por %p155, %p156
      %p158 = scmp.ne.s32.totalorder %s150, %s153
      %p159 = scmp.eq.s32.totalorder %s31, 0
      %p160 = por %p158, %p159
      %p161 = scmp.ne.s32.totalorder %s150, %s153
      %p162 = scmp.eq.s32.totalorder %s36, 1
      %p163 = por %p161, %p162
      %p164 = scmp.ne.s32.totalorder %s153, %s154
      %p165 = scmp.eq.s32.totalorder %s36, 0
      %p166 = por %p164, %p165
      %p167 = scmp.ne.s32.totalorder %s153, %s154
      %p168 = scmp.eq.s32.totalorder %s37, 1
      %p169 = por %p167, %p168
      %p171 = scmp.ne.s32.totalorder %s154, %s170
      %p172 = scmp.eq.s32.totalorder %s37, 0
      %p173 = por %p171, %p172
      %s174 = ssub.s32 %s40, %s49
      %p175 = scmp.eq.s32.totalorder %s174, 0
      %s177 = sadd.s32 %s176, 1
      %s178 = scalar_select %p175, %s176, %s177
      %p181 = pneg %p175
      %p182 = scmp.eq.s32.totalorder %s31, 1
      %p183 = por %p181, %p182
      %p184 = scmp.ne.s32.totalorder %s176, %s179
      %p185 = scmp.eq.s32.totalorder %s31, 0
      %p186 = por %p184, %p185
      %p187 = scmp.ne.s32.totalorder %s176, %s179
      %p188 = scmp.eq.s32.totalorder %s36, 1
      %p189 = por %p187, %p188
      %p190 = scmp.ne.s32.totalorder %s179, %s180
      %p191 = scmp.eq.s32.totalorder %s36, 0
      %p192 = por %p190, %p191
      %p193 = scmp.ne.s32.totalorder %s179, %s180
      %p194 = scmp.eq.s32.totalorder %s37, 1
      %p195 = por %p193, %p194
      %p197 = scmp.ne.s32.totalorder %s180, %s196
      %p198 = scmp.eq.s32.totalorder %s37, 0
      %p199 = por %p197, %p198
      %s200 = ssub.s32 %s40, %s49
      %p201 = scmp.eq.s32.totalorder %s200, 0
      %s203 = sadd.s32 %s202, 1
      %s204 = scalar_select %p201, %s202, %s203
      %p207 = pneg %p201
      %p208 = scmp.eq.s32.totalorder %s31, 1
      %p209 = por %p207, %p208
      %p210 = scmp.ne.s32.totalorder %s202, %s205
      %p211 = scmp.eq.s32.totalorder %s31, 0
      %p212 = por %p210, %p211
      %p213 = scmp.ne.s32.totalorder %s202, %s205
      %p214 = scmp.eq.s32.totalorder %s36, 1
      %p215 = por %p213, %p214
      %p216 = scmp.ne.s32.totalorder %s205, %s206
      %p217 = scmp.eq.s32.totalorder %s36, 0
      %p218 = por %p216, %p217
      %p219 = scmp.ne.s32.totalorder %s205, %s206
      %p220 = scmp.eq.s32.totalorder %s37, 1
      %p221 = por %p219, %p220
      %p223 = scmp.ne.s32.totalorder %s206, %s222
      %p224 = scmp.eq.s32.totalorder %s37, 0
      %p225 = por %p223, %p224
      %s226 = ssub.s32 %s39, %s53
      %p227 = scmp.eq.s32.totalorder %s226, 0
      %s229 = sadd.s32 %s228, 1
      %s230 = scalar_select %p227, %s228, %s229
      %p233 = pneg %p227
      %p234 = scmp.eq.s32.totalorder %s31, 1
      %p235 = por %p233, %p234
      %p236 = scmp.ne.s32.totalorder %s228, %s231
      %p237 = scmp.eq.s32.totalorder %s31, 0
      %p238 = por %p236, %p237
      %p239 = scmp.ne.s32.totalorder %s228, %s231
      %p240 = scmp.eq.s32.totalorder %s36, 1
      %p241 = por %p239, %p240
      %p242 = scmp.ne.s32.totalorder %s231, %s232
      %p243 = scmp.eq.s32.totalorder %s36, 0
      %p244 = por %p242, %p243
      %p245 = scmp.ne.s32.totalorder %s231, %s232
      %p246 = scmp.eq.s32.totalorder %s37, 1
      %p247 = por %p245, %p246
      %p249 = scmp.ne.s32.totalorder %s232, %s248
      %p250 = scmp.eq.s32.totalorder %s37, 0
      %p251 = por %p249, %p250
      %s252 = ssub.s32 %s39, %s53
      %p253 = scmp.eq.s32.totalorder %s252, 0
      %s255 = sadd.s32 %s254, 1
      %s256 = scalar_select %p253, %s254, %s255
      %p259 = pneg %p253
      %p260 = scmp.eq.s32.totalorder %s31, 1
      %p261 = por %p259, %p260
      %p262 = scmp.ne.s32.totalorder %s254, %s257
      %p263 = scmp.eq.s32.totalorder %s31, 0
      %p264 = por %p262, %p263
      %p265 = scmp.ne.s32.totalorder %s254, %s257
      %p266 = scmp.eq.s32.totalorder %s36, 1
      %p267 = por %p265, %p266
      %p268 = scmp.ne.s32.totalorder %s257, %s258
      %p269 = scmp.eq.s32.totalorder %s36, 0
      %p270 = por %p268, %p269
      %p271 = scmp.ne.s32.totalorder %s257, %s258
      %p272 = scmp.eq.s32.totalorder %s37, 1
      %p273 = por %p271, %p272
      %p275 = scmp.ne.s32.totalorder %s258, %s274
      %p276 = scmp.eq.s32.totalorder %s37, 0
      %p277 = por %p275, %p276
      %s278 = ssub.s32 %s38, %s57
      %s279 = ssub.s32 %s39, %s53
      %s280 = sor.u32 %s278, %s279
      %p281 = scmp.eq.s32.totalorder %s280, 0
      %s283 = sadd.s32 %s282, 1
      %s284 = scalar_select %p281, %s282, %s283
      %p287 = pneg %p281
      %p288 = scmp.eq.s32.totalorder %s31, 1
      %p289 = por %p287, %p288
      %p290 = scmp.ne.s32.totalorder %s282, %s285
      %p291 = scmp.eq.s32.totalorder %s31, 0
      %p292 = por %p290, %p291
      %p293 = scmp.ne.s32.totalorder %s282, %s285
      %p294 = scmp.eq.s32.totalorder %s36, 1
      %p295 = por %p293, %p294
      %p296 = scmp.ne.s32.totalorder %s285, %s286
      %p297 = scmp.eq.s32.totalorder %s36, 0
      %p298 = por %p296, %p297
      %p299 = scmp.ne.s32.totalorder %s285, %s286
      %p300 = scmp.eq.s32.totalorder %s37, 1
      %p301 = por %p299, %p300
      %p303 = scmp.ne.s32.totalorder %s286, %s302
      %p304 = scmp.eq.s32.totalorder %s37, 0
      %p305 = por %p303, %p304
      %s306 = ssub.s32 %s38, %s57
      %s307 = ssub.s32 %s39, %s53
      %s308 = sor.u32 %s306, %s307
      %p309 = scmp.eq.s32.totalorder %s308, 0
      %s311 = sadd.s32 %s310, 1
      %s312 = scalar_select %p309, %s310, %s311
      %p315 = pneg %p309
      %p316 = scmp.eq.s32.totalorder %s31, 1
      %p317 = por %p315, %p316
      %p318 = scmp.ne.s32.totalorder %s310, %s313
      %p319 = scmp.eq.s32.totalorder %s31, 0
      %p320 = por %p318, %p319
      %p321 = scmp.ne.s32.totalorder %s310, %s313
      %p322 = scmp.eq.s32.totalorder %s36, 1
      %p323 = por %p321, %p322
      %p324 = scmp.ne.s32.totalorder %s313, %s314
      %p325 = scmp.eq.s32.totalorder %s36, 0
      %p326 = por %p324, %p325
      %p327 = scmp.ne.s32.totalorder %s313, %s314
      %p328 = scmp.eq.s32.totalorder %s37, 1
      %p329 = por %p327, %p328
      %p331 = scmp.ne.s32.totalorder %s314, %s330
      %p332 = scmp.eq.s32.totalorder %s37, 0
      %p333 = por %p331, %p332
      %s334 = ssub.s32 %s38, %s57
      %s335 = ssub.s32 %s39, %s53
      %s336 = sor.u32 %s334, %s335
      %p337 = scmp.eq.s32.totalorder %s336, 0
      %s339 = sadd.s32 %s338, 1
      %s340 = scalar_select %p337, %s338, %s339
      %p343 = pneg %p337
      %p344 = scmp.eq.s32.totalorder %s31, 1
      %p345 = por %p343, %p344
      %p346 = scmp.ne.s32.totalorder %s338, %s341
      %p347 = scmp.eq.s32.totalorder %s31, 0
      %p348 = por %p346, %p347
      %p349 = scmp.ne.s32.totalorder %s338, %s341
      %p350 = scmp.eq.s32.totalorder %s36, 1
      %p351 = por %p349, %p350
      %p352 = scmp.ne.s32.totalorder %s341, %s342
      %p353 = scmp.eq.s32.totalorder %s36, 0
      %p354 = por %p352, %p353
      %p355 = scmp.ne.s32.totalorder %s341, %s342
      %p356 = scmp.eq.s32.totalorder %s37, 1
      %p357 = por %p355, %p356
      %p359 = scmp.ne.s32.totalorder %s342, %s358
      %p360 = scmp.eq.s32.totalorder %s37, 0
      %p361 = por %p359, %p360
      %p362 = scmp.le.s32.totalorder 1, %s31
      %p363 = scmp.lt.s32.totalorder %s31, 3
      %p364 = pnand %p362, %p363
      %p365 = pneg %p364
      // Predicated region
      $region9: #{tpu_custom_call.1} parent=5 // pred_check
        _
      $region10: #{tpu_custom_call.1} parent=5 // pred_check_branch
        %367 = sbr.rel (%p364) target = $region12
      $region11: #{tpu_custom_call.1} parent=5 // pred_region
        %s368 = ssub.s32 %s31, 1
        // Predicated region
        $region13: #{tpu_custom_call.1} parent=11 // pred_check
          %p369 = pneg %p166
        $region14: #{tpu_custom_call.1} parent=11 // pred_check_branch
          %371 = sbr.rel (%p369) target = $region16
        $region15: #{tpu_custom_call.1} parent=11 // pred_region
          %s372 = smul.u32 16, %s43
          %s374 = ssub.s32 1024, 1024
          %375 = vsyncadd [#allocation12], %s374
          %s376 = smul.addr %s372, 64
          %s377 = scalar_lea.hbm %s3, %s376
          %s378 = sshll.u32 [#allocation11], 4
          %s379 = int_to_ptr.vmem [resolvable:$true] %s378
          %384 = dma.hbm_to_vmem [thread:$0]  %s377, 1024, %s379, [#allocation12], 64, 64, 4
        $region16: #{tpu_custom_call.1} parent=11 // pred_fallthru
          _
        // Predicated region
        $region17: #{tpu_custom_call.1} parent=11 // pred_check
          %p385 = pneg %p192
        $region18: #{tpu_custom_call.1} parent=11 // pred_check_branch
          %387 = sbr.rel (%p385) target = $region20
        $region19: #{tpu_custom_call.1} parent=11 // pred_region
          %s388 = smul.u32 16, %s43
          %s390 = ssub.s32 1024, 1024
          %391 = vsyncadd [#allocation12], %s390
          %s392 = smul.addr %s388, 64
          %s393 = scalar_lea.hbm %s4, %s392
          %s394 = sshll.u32 [#allocation13], 4
          %s395 = int_to_ptr.vmem [resolvable:$true] %s394
          %400 = dma.hbm_to_vmem [thread:$0]  %s393, 1024, %s395, [#allocation12], 64, 64, 4
        $region20: #{tpu_custom_call.1} parent=11 // pred_fallthru
          _
        // Predicated region
        $region21: #{tpu_custom_call.1} parent=11 // pred_check
          %p401 = pneg %p218
        $region22: #{tpu_custom_call.1} parent=11 // pred_check_branch
          %403 = sbr.rel (%p401) target = $region24
        $region23: #{tpu_custom_call.1} parent=11 // pred_region
          %s404 = smul.u32 16, %s43
          %s406 = ssub.s32 1024, 1024
          %407 = vsyncadd [#allocation15], %s406
          %s408 = smul.addr %s404, 64
          %s409 = scalar_lea.hbm %s5, %s408
          %s410 = sshll.u32 [#allocation14], 4
          %s411 = int_to_ptr.vmem [resolvable:$true] %s410
          %416 = dma.hbm_to_vmem [thread:$0]  %s409, 1024, %s411, [#allocation15], 64, 64, 4
        $region24: #{tpu_custom_call.1} parent=11 // pred_fallthru
          _
        // Predicated region
        $region25: #{tpu_custom_call.1} parent=11 // pred_check
          %p417 = pneg %p244
        $region26: #{tpu_custom_call.1} parent=11 // pred_check_branch
          %419 = sbr.rel (%p417) target = $region28
        $region27: #{tpu_custom_call.1} parent=11 // pred_region
          %p420 = scmp.lt.s32.totalorder %s42, 0
          %s421 = scalar_select %p420, %s42, 0
          %s422 = smul.addr %s421, 8
          %s423 = scalar_lea.vmem %s6, %s422
        $region28: #{tpu_custom_call.1} parent=11 // pred_fallthru
          _
        // Predicated region
        $region29: #{tpu_custom_call.1} parent=11 // pred_check
          %p424 = pneg %p270
        $region30: #{tpu_custom_call.1} parent=11 // pred_check_branch
          %426 = sbr.rel (%p424) target = $region32
        $region31: #{tpu_custom_call.1} parent=11 // pred_region
          %s428 = ssub.s32 128, 128
          %429 = vsyncadd [#allocation15], %s428
          %s430 = smul.addr %s42, 128
          %s431 = scalar_lea.hbm %s7, %s430
          %s433 = sshll.u32 [#allocation16], 4
          %s434 = int_to_ptr.vmem [resolvable:$true] %s433
          %436 = dma.hbm_to_vmem [thread:$0]  %s431, 128, %s434, [#allocation15]
        $region32: #{tpu_custom_call.1} parent=11 // pred_fallthru
          _
      $region12: #{tpu_custom_call.1} parent=5 // pred_fallthru
        _
      %p437 = scmp.lt.s32.totalorder %s31, 2
      // Predicated region
      $region33: #{tpu_custom_call.1} parent=5 // pred_check
        %p438 = pneg %p437
      $region34: #{tpu_custom_call.1} parent=5 // pred_check_branch
        %440 = sbr.rel (%p438) target = $region36
      $region35: #{tpu_custom_call.1} parent=5 // pred_region
        // Predicated region
        $region37: #{tpu_custom_call.1} parent=35 // pred_check
          %p441 = pneg %p74
        $region38: #{tpu_custom_call.1} parent=35 // pred_check_branch
          %443 = sbr.rel (%p441) target = $region40
        $region39: #{tpu_custom_call.1} parent=35 // pred_region
          %s444 = sand.u32 %s64, 1
          %s445 = scalar_lea.sflag [#allocation6], %s444
          %s446 = sand.u32 %s64, 1
          %s447 = smul.addr %s446, 8
          %s448 = scalar_lea.vmem [#allocation5], %s447
          %s450 = ssub.s32 128, 128
          %451 = vsyncadd %s445, %s450
          %s452 = sadd.s32 %s40, %s39
          %s453 = sadd.s32 %s452, %s38
          %s454 = smul.addr %s453, 128
          %s455 = scalar_lea.hbm %s0, %s454
          %s457 = sshll.u32 %s448, 4
          %s458 = int_to_ptr.vmem [resolvable:$true] %s457
          %460 = dma.hbm_to_vmem [thread:$0]  %s455, 128, %s458, %s445
        $region40: #{tpu_custom_call.1} parent=35 // pred_fallthru
          _
        // Predicated region
        $region41: #{tpu_custom_call.1} parent=35 // pred_check
          %p461 = pneg %p104
        $region42: #{tpu_custom_call.1} parent=35 // pred_check_branch
          %463 = sbr.rel (%p461) target = $region44
        $region43: #{tpu_custom_call.1} parent=35 // pred_region
          %s464 = sand.u32 %s31, 1
          %s465 = scalar_lea.sflag [#allocation9], %s464
          %s466 = sand.u32 %s94, 1
          %s467 = smul.addr %s466, 8
          %s468 = scalar_lea.vmem [#allocation8], %s467
          %s470 = ssub.s32 128, 128
          %471 = vsyncadd %s465, %s470
          %s472 = sadd.s32 %s40, %s39
          %s473 = sadd.s32 %s472, %s38
          %s474 = smul.addr %s473, 128
          %s475 = scalar_lea.hbm %s1, %s474
          %s477 = sshll.u32 %s468, 4
          %s478 = int_to_ptr.vmem [resolvable:$true] %s477
          %480 = dma.hbm_to_vmem [thread:$0]  %s475, 128, %s478, %s465
        $region44: #{tpu_custom_call.1} parent=35 // pred_fallthru
          _
        // Predicated region
        $region45: #{tpu_custom_call.1} parent=35 // pred_check
          %p481 = pneg %p134
        $region46: #{tpu_custom_call.1} parent=35 // pred_check_branch
          %483 = sbr.rel (%p481) target = $region48
        $region47: #{tpu_custom_call.1} parent=35 // pred_region
          %s484 = sand.u32 %s31, 1
          %s485 = scalar_lea.sflag [#allocation9], %s484
          %s486 = sand.u32 %s124, 1
          %s487 = smul.addr %s486, 8
          %s488 = scalar_lea.vmem [#allocation10], %s487
          %s490 = ssub.s32 128, 128
          %491 = vsyncadd %s485, %s490
          %s492 = sadd.s32 %s40, %s39
          %s493 = sadd.s32 %s492, %s38
          %s494 = smul.addr %s493, 128
          %s495 = scalar_lea.hbm %s2, %s494
          %s497 = sshll.u32 %s488, 4
          %s498 = int_to_ptr.vmem [resolvable:$true] %s497
          %500 = dma.hbm_to_vmem [thread:$0]  %s495, 128, %s498, %s485
        $region48: #{tpu_custom_call.1} parent=35 // pred_fallthru
          _
      $region36: #{tpu_custom_call.1} parent=5 // pred_fallthru
        _
      %p501 = scmp.le.s32.totalorder 1, %s31
      %p502 = scmp.lt.s32.totalorder %s31, 3
      %p503 = pnand %p501, %p502
      %p504 = pneg %p503
      // Predicated region
      $region49: #{tpu_custom_call.1} parent=5 // pred_check
        _
      $region50: #{tpu_custom_call.1} parent=5 // pred_check_branch
        %506 = sbr.rel (%p503) target = $region52
      $region51: #{tpu_custom_call.1} parent=5 // pred_region
        %s507 = ssub.s32 %s31, 1
        %s508 = sand.u32 %s67, 1
        %s509 = scalar_lea.sflag [#allocation6], %s508
        %s510 = sand.u32 %s67, 1
        %s511 = smul.addr %s510, 8
        %s512 = scalar_lea.vmem [#allocation5], %s511
        // Predicated region
        $region53: #{tpu_custom_call.1} parent=51 // pred_check
          %p513 = pneg %p80
        $region54: #{tpu_custom_call.1} parent=51 // pred_check_branch
          %515 = sbr.rel (%p513) target = $region56
        $region55: #{tpu_custom_call.1} parent=51 // pred_region
          %516 = dma.done %s509, 128
        $region56: #{tpu_custom_call.1} parent=51 // pred_fallthru
          _
        %s517 = sand.u32 %s36, 1
        %s518 = scalar_lea.sflag [#allocation9], %s517
        %s519 = sand.u32 %s97, 1
        %s520 = smul.addr %s519, 8
        %s521 = scalar_lea.vmem [#allocation8], %s520
        // Predicated region
        $region57: #{tpu_custom_call.1} parent=51 // pred_check
          %p522 = pneg %p110
        $region58: #{tpu_custom_call.1} parent=51 // pred_check_branch
          %524 = sbr.rel (%p522) target = $region60
        $region59: #{tpu_custom_call.1} parent=51 // pred_region
          %525 = dma.done %s518, 128
        $region60: #{tpu_custom_call.1} parent=51 // pred_fallthru
          _
        %s526 = sand.u32 %s36, 1
        %s527 = scalar_lea.sflag [#allocation9], %s526
        %s528 = sand.u32 %s127, 1
        %s529 = smul.addr %s528, 8
        %s530 = scalar_lea.vmem [#allocation10], %s529
        // Predicated region
        $region61: #{tpu_custom_call.1} parent=51 // pred_check
          %p531 = pneg %p140
        $region62: #{tpu_custom_call.1} parent=51 // pred_check_branch
          %533 = sbr.rel (%p531) target = $region64
        $region63: #{tpu_custom_call.1} parent=51 // pred_region
          %534 = dma.done %s527, 128
        $region64: #{tpu_custom_call.1} parent=51 // pred_fallthru
          _
        // Predicated region
        $region65: #{tpu_custom_call.1} parent=51 // pred_check
          %p535 = pneg %p166
        $region66: #{tpu_custom_call.1} parent=51 // pred_check_branch
          %537 = sbr.rel (%p535) target = $region68
        $region67: #{tpu_custom_call.1} parent=51 // pred_region
          %538 = dma.done [#allocation12], 1024
        $region68: #{tpu_custom_call.1} parent=51 // pred_fallthru
          _
        // Predicated region
        $region69: #{tpu_custom_call.1} parent=51 // pred_check
          %p539 = pneg %p192
        $region70: #{tpu_custom_call.1} parent=51 // pred_check_branch
          %541 = sbr.rel (%p539) target = $region72
        $region71: #{tpu_custom_call.1} parent=51 // pred_region
          %542 = dma.done [#allocation12], 1024
        $region72: #{tpu_custom_call.1} parent=51 // pred_fallthru
          _
        // Predicated region
        $region73: #{tpu_custom_call.1} parent=51 // pred_check
          %p543 = pneg %p218
        $region74: #{tpu_custom_call.1} parent=51 // pred_check_branch
          %545 = sbr.rel (%p543) target = $region76
        $region75: #{tpu_custom_call.1} parent=51 // pred_region
          %546 = dma.done [#allocation15], 1024
        $region76: #{tpu_custom_call.1} parent=51 // pred_fallthru
          _
        // Predicated region
        $region77: #{tpu_custom_call.1} parent=51 // pred_check
          %p547 = pneg %p270
        $region78: #{tpu_custom_call.1} parent=51 // pred_check_branch
          %549 = sbr.rel (%p547) target = $region80
        $region79: #{tpu_custom_call.1} parent=51 // pred_region
          %550 = dma.done [#allocation15], 128
        $region80: #{tpu_custom_call.1} parent=51 // pred_fallthru
          _
        %s551 = sand.u32 %s67, 1
        %s552 = scalar_lea.sflag [#allocation6], %s551
        %s553 = sand.u32 %s67, 1
        %s554 = smul.addr %s553, 8
        %s555 = scalar_lea.vmem [#allocation5], %s554
        %p556 = pneg %p80
        %p557 = pneg %p77
        %s558 = sand.u32 %s36, 1
        %s559 = scalar_lea.sflag [#allocation9], %s558
        %s560 = sand.u32 %s97, 1
        %s561 = smul.addr %s560, 8
        %s562 = scalar_lea.vmem [#allocation8], %s561
        %p563 = pneg %p110
        %p564 = pneg %p107
        %s565 = sand.u32 %s36, 1
        %s566 = scalar_lea.sflag [#allocation9], %s565
        %s567 = sand.u32 %s127, 1
        %s568 = smul.addr %s567, 8
        %s569 = scalar_lea.vmem [#allocation10], %s568
        %p570 = pneg %p140
        %p571 = pneg %p137
        %p572 = pneg %p166
        %p573 = pneg %p163
        %p574 = pneg %p192
        %p575 = pneg %p189
        %p576 = pneg %p218
        %p577 = pneg %p215
        %p578 = scmp.lt.s32.totalorder %s42, 0
        %s579 = scalar_select %p578, %s42, 0
        %s580 = smul.addr %s579, 8
        %s581 = scalar_lea.vmem %s6, %s580
        %p582 = pneg %p244
        %p583 = pneg %p241
        %p584 = pneg %p270
        %p585 = pneg %p267
        %p586 = pneg %p298
        %p587 = pneg %p295
        %s588 = sand.u32 %s285, 1
        %s589 = scalar_lea.sflag [#allocation7], %s588
        %s590 = sand.u32 %s285, 1
        %s591 = smul.addr %s590, 4
        %s592 = scalar_lea.vmem [#allocation17], %s591
        %p593 = pneg %p326
        %p594 = pneg %p323
        %s595 = sand.u32 %s36, 1
        %s596 = scalar_lea.sflag [#allocation19], %s595
        %s597 = sand.u32 %s313, 1
        %s598 = smul.addr %s597, 4
        %s599 = scalar_lea.vmem [#allocation18], %s598
        %p600 = pneg %p354
        %p601 = pneg %p351
        %s602 = sand.u32 %s36, 1
        %s603 = scalar_lea.sflag [#allocation19], %s602
        %s604 = sand.u32 %s341, 1
        %s605 = smul.addr %s604, 4
        %s606 = scalar_lea.vmem [#allocation20], %s605
        %s607 = smul.u32 16, %s43
        %s608 = smul.u32 16, %s43
        %s609 = smul.u32 16, %s43
        %p610 = scmp.lt.s32.totalorder %s42, 0
        %s611 = scalar_select %p610, %s42, 0
        %s612 = smul.addr %s611, 8
        %s613 = scalar_lea.vmem %s6, %s612
        %p615 = scmp.eq.s32.totalorder %s43, 0
        // Predicated region
        $region81: #{tpu_custom_call.1} parent=51 // pred_check
          %p616 = pneg %p615
        $region82: #{tpu_custom_call.1} parent=51 // pred_check_branch
          %618 = sbr.rel (%p616) target = $region84
        $region83: #{tpu_custom_call.1} parent=51 // pred_region
          %619 = vst [vmem:[#allocation2] sm:$0xff] 0.0
          %620 = vst [vmem:[#allocation3] sm:$0xff] 0.0
          %621 = vst [vmem:[#allocation4] sm:$0xff] 0.0
        $region84: #{tpu_custom_call.1} parent=51 // pred_fallthru
          _
        %v622 = vld [vmem:[%s512] sm:$0xff]
        %v623 = vpack.c.bf16 %v622, %v622
        %v624 = vld [vmem:[%s521] sm:$0xff]
        %v625 = vpack.c.bf16 %v624, %v624
        %v626 = vld [vmem:[%s530] sm:$0xff]
        %v627 = vpack.c.bf16 %v626, %v626
        %v628 = vld [vmem:[#allocation2] sm:$0xff]
        %v629 = vld [vmem:[#allocation11] sm:$0xf]
        %v630 = vld [vmem:[#allocation11 + $0x4] sm:$0xf]
        %v631 = vld [vmem:[#allocation11 + $0x8] sm:$0xf]
        %v632 = vld [vmem:[#allocation11 + $0xc] sm:$0xf]
        %v633 = vld [vmem:[#allocation11 + $0x10] sm:$0xf]
        %v634 = vld [vmem:[#allocation11 + $0x14] sm:$0xf]
        %v635 = vld [vmem:[#allocation11 + $0x18] sm:$0xf]
        %v636 = vld [vmem:[#allocation11 + $0x1c] sm:$0xf]
        %v637 = vld [vmem:[#allocation11 + $0x20] sm:$0xf]
        %v638 = vld [vmem:[#allocation11 + $0x24] sm:$0xf]
        %v639 = vld [vmem:[#allocation11 + $0x28] sm:$0xf]
        %v640 = vld [vmem:[#allocation11 + $0x2c] sm:$0xf]
        %v641 = vld [vmem:[#allocation11 + $0x30] sm:$0xf]
        %v642 = vld [vmem:[#allocation11 + $0x34] sm:$0xf]
        %v643 = vld [vmem:[#allocation11 + $0x38] sm:$0xf]
        %v644 = vld [vmem:[#allocation11 + $0x3c] sm:$0xf]
        %v661 = vunpack.c.l.b16 %v629
        %v662 = vunpack.c.l.b16 %v630
        %v663 = vunpack.c.l.b16 %v631
        %v664 = vunpack.c.l.b16 %v632
        %v665 = vunpack.c.l.b16 %v633
        %v666 = vunpack.c.l.b16 %v634
        %v667 = vunpack.c.l.b16 %v635
        %v668 = vunpack.c.l.b16 %v636
        %v669 = vunpack.c.l.b16 %v637
        %v670 = vunpack.c.l.b16 %v638
        %v671 = vunpack.c.l.b16 %v639
        %v672 = vunpack.c.l.b16 %v640
        %v673 = vunpack.c.l.b16 %v641
        %v674 = vunpack.c.l.b16 %v642
        %v675 = vunpack.c.l.b16 %v643
        %v676 = vunpack.c.l.b16 %v644
        %v677 = vpack.c.b16 %v662, %v661
        %v678 = vpack.c.b16 %v664, %v663
        %v679 = vpack.c.b16 %v666, %v665
        %v680 = vpack.c.b16 %v668, %v667
        %v681 = vpack.c.b16 %v670, %v669
        %v682 = vpack.c.b16 %v672, %v671
        %v683 = vpack.c.b16 %v674, %v673
        %v684 = vpack.c.b16 %v676, %v675
        %693 = vmatprep.subr.bf16.mxu0 0
        %694 = vmatpush1.bf16.msra.mxu0 %v684
        %695 = vmatprep.subr.bf16.mxu0 0
        %696 = vmatpush1.bf16.msra.mxu0 %v683
        %697 = vmatprep.subr.bf16.mxu0 0
        %698 = vmatpush1.bf16.msra.mxu0 %v682
        %699 = vmatprep.subr.bf16.mxu0 0
        %700 = vmatpush1.bf16.msra.mxu0 %v681
        %701 = vmatprep.subr.bf16.mxu0 0
        %702 = vmatpush1.bf16.msra.mxu0 %v680
        %703 = vmatprep.subr.bf16.mxu0 0
        %704 = vmatpush1.bf16.msra.mxu0 %v679
        %705 = vmatprep.subr.bf16.mxu0 0
        %706 = vmatpush1.bf16.msra.mxu0 %v678
        %707 = vmatprep.subr.bf16.mxu0 0
        %708 = vmatpush1.bf16.msra.mxu0 %v677
        %709 = vmatprep.subr.bf16.mxu0 0
        %710 = vmatpush2.bf16.msra.mxu0 0
        %711 = vmatprep.subr.bf16.mxu0 0
        %712 = vmatpush2.bf16.msra.mxu0 0
        %713 = vmatprep.subr.bf16.mxu0 0
        %714 = vmatpush2.bf16.msra.mxu0 0
        %715 = vmatprep.subr.bf16.mxu0 0
        %716 = vmatpush2.bf16.msra.mxu0 0
        %717 = vmatprep.subr.bf16.mxu0 0
        %718 = vmatpush2.bf16.msra.mxu0 0
        %719 = vmatprep.subr.bf16.mxu0 0
        %720 = vmatpush2.bf16.msra.mxu0 0
        %721 = vmatprep.subr.bf16.mxu0 0
        %722 = vmatpush2.bf16.msra.mxu0 0
        %723 = vmatprep.subr.bf16.mxu0 0
        %724 = vmatpush2.bf16.msra.mxu0 0
        %725 = vmatprep.mubr.bf16.mxu0 0
        %726 = vmatmul.mubr.bf16.gmra.mxu0 %v623
        %v727 = vpop.f32.mrf.mxu0
        %v728 = vadd.f32 0.0, %v727
        %v729 = vpop.f32.mrf.mxu0
        %v730 = vpop.f32.mrf.mxu0
        %v731 = vpop.f32.mrf.mxu0
        %732 = vdwg.mxu0
        %v733 = vadd.f32 %v628, %v728
        %734 = vst [vmem:[#allocation2] sm:$0xff] %v733
        %v735 = vld [vmem:[#allocation3] sm:$0xff]
        %v736 = vld [vmem:[#allocation13] sm:$0xf]
        %v737 = vld [vmem:[#allocation13 + $0x4] sm:$0xf]
        %v738 = vld [vmem:[#allocation13 + $0x8] sm:$0xf]
        %v739 = vld [vmem:[#allocation13 + $0xc] sm:$0xf]
        %v740 = vld [vmem:[#allocation13 + $0x10] sm:$0xf]
        %v741 = vld [vmem:[#allocation13 + $0x14] sm:$0xf]
        %v742 = vld [vmem:[#allocation13 + $0x18] sm:$0xf]
        %v743 = vld [vmem:[#allocation13 + $0x1c] sm:$0xf]
        %v744 = vld [vmem:[#allocation13 + $0x20] sm:$0xf]
        %v745 = vld [vmem:[#allocation13 + $0x24] sm:$0xf]
        %v746 = vld [vmem:[#allocation13 + $0x28] sm:$0xf]
        %v747 = vld [vmem:[#allocation13 + $0x2c] sm:$0xf]
        %v748 = vld [vmem:[#allocation13 + $0x30] sm:$0xf]
        %v749 = vld [vmem:[#allocation13 + $0x34] sm:$0xf]
        %v750 = vld [vmem:[#allocation13 + $0x38] sm:$0xf]
        %v751 = vld [vmem:[#allocation13 + $0x3c] sm:$0xf]
        %v768 = vunpack.c.l.b16 %v736
        %v769 = vunpack.c.l.b16 %v737
        %v770 = vunpack.c.l.b16 %v738
        %v771 = vunpack.c.l.b16 %v739
        %v772 = vunpack.c.l.b16 %v740
        %v773 = vunpack.c.l.b16 %v741
        %v774 = vunpack.c.l.b16 %v742
        %v775 = vunpack.c.l.b16 %v743
        %v776 = vunpack.c.l.b16 %v744
        %v777 = vunpack.c.l.b16 %v745
        %v778 = vunpack.c.l.b16 %v746
        %v779 = vunpack.c.l.b16 %v747
        %v780 = vunpack.c.l.b16 %v748
        %v781 = vunpack.c.l.b16 %v749
        %v782 = vunpack.c.l.b16 %v750
        %v783 = vunpack.c.l.b16 %v751
        %v784 = vpack.c.b16 %v769, %v768
        %v785 = vpack.c.b16 %v771, %v770
        %v786 = vpack.c.b16 %v773, %v772
        %v787 = vpack.c.b16 %v775, %v774
        %v788 = vpack.c.b16 %v777, %v776
        %v789 = vpack.c.b16 %v779, %v778
        %v790 = vpack.c.b16 %v781, %v780
        %v791 = vpack.c.b16 %v783, %v782
        %800 = vmatprep.subr.bf16.mxu0 0
        %801 = vmatpush1.bf16.msra.mxu0 %v791
        %802 = vmatprep.subr.bf16.mxu0 0
        %803 = vmatpush1.bf16.msra.mxu0 %v790
        %804 = vmatprep.subr.bf16.mxu0 0
        %805 = vmatpush1.bf16.msra.mxu0 %v789
        %806 = vmatprep.subr.bf16.mxu0 0
        %807 = vmatpush1.bf16.msra.mxu0 %v788
        %808 = vmatprep.subr.bf16.mxu0 0
        %809 = vmatpush1.bf16.msra.mxu0 %v787
        %810 = vmatprep.subr.bf16.mxu0 0
        %811 = vmatpush1.bf16.msra.mxu0 %v786
        %812 = vmatprep.subr.bf16.mxu0 0
        %813 = vmatpush1.bf16.msra.mxu0 %v785
        %814 = vmatprep.subr.bf16.mxu0 0
        %815 = vmatpush1.bf16.msra.mxu0 %v784
        %816 = vmatprep.subr.bf16.mxu0 0
        %817 = vmatpush2.bf16.msra.mxu0 0
        %818 = vmatprep.subr.bf16.mxu0 0
        %819 = vmatpush2.bf16.msra.mxu0 0
        %820 = vmatprep.subr.bf16.mxu0 0
        %821 = vmatpush2.bf16.msra.mxu0 0
        %822 = vmatprep.subr.bf16.mxu0 0
        %823 = vmatpush2.bf16.msra.mxu0 0
        %824 = vmatprep.subr.bf16.mxu0 0
        %825 = vmatpush2.bf16.msra.mxu0 0
        %826 = vmatprep.subr.bf16.mxu0 0
        %827 = vmatpush2.bf16.msra.mxu0 0
        %828 = vmatprep.subr.bf16.mxu0 0
        %829 = vmatpush2.bf16.msra.mxu0 0
        %830 = vmatprep.subr.bf16.mxu0 0
        %831 = vmatpush2.bf16.msra.mxu0 0
        %832 = vmatprep.mubr.bf16.mxu0 0
        %833 = vmatmul.mubr.bf16.gmra.mxu0 %v625
        %v834 = vpop.f32.mrf.mxu0
        %v835 = vadd.f32 0.0, %v834
        %v836 = vpop.f32.mrf.mxu0
        %v837 = vpop.f32.mrf.mxu0
        %v838 = vpop.f32.mrf.mxu0
        %839 = vdwg.mxu0
        %v840 = vadd.f32 %v735, %v835
        %841 = vst [vmem:[#allocation3] sm:$0xff] %v840
        %v842 = vld [vmem:[#allocation4] sm:$0xff]
        %v843 = vld [vmem:[#allocation14] sm:$0xf]
        %v844 = vld [vmem:[#allocation14 + $0x4] sm:$0xf]
        %v845 = vld [vmem:[#allocation14 + $0x8] sm:$0xf]
        %v846 = vld [vmem:[#allocation14 + $0xc] sm:$0xf]
        %v847 = vld [vmem:[#allocation14 + $0x10] sm:$0xf]
        %v848 = vld [vmem:[#allocation14 + $0x14] sm:$0xf]
        %v849 = vld [vmem:[#allocation14 + $0x18] sm:$0xf]
        %v850 = vld [vmem:[#allocation14 + $0x1c] sm:$0xf]
        %v851 = vld [vmem:[#allocation14 + $0x20] sm:$0xf]
        %v852 = vld [vmem:[#allocation14 + $0x24] sm:$0xf]
        %v853 = vld [vmem:[#allocation14 + $0x28] sm:$0xf]
        %v854 = vld [vmem:[#allocation14 + $0x2c] sm:$0xf]
        %v855 = vld [vmem:[#allocation14 + $0x30] sm:$0xf]
        %v856 = vld [vmem:[#allocation14 + $0x34] sm:$0xf]
        %v857 = vld [vmem:[#allocation14 + $0x38] sm:$0xf]
        %v858 = vld [vmem:[#allocation14 + $0x3c] sm:$0xf]
        %v875 = vunpack.c.l.b16 %v843
        %v876 = vunpack.c.l.b16 %v844
        %v877 = vunpack.c.l.b16 %v845
        %v878 = vunpack.c.l.b16 %v846
        %v879 = vunpack.c.l.b16 %v847
        %v880 = vunpack.c.l.b16 %v848
        %v881 = vunpack.c.l.b16 %v849
        %v882 = vunpack.c.l.b16 %v850
        %v883 = vunpack.c.l.b16 %v851
        %v884 = vunpack.c.l.b16 %v852
        %v885 = vunpack.c.l.b16 %v853
        %v886 = vunpack.c.l.b16 %v854
        %v887 = vunpack.c.l.b16 %v855
        %v888 = vunpack.c.l.b16 %v856
        %v889 = vunpack.c.l.b16 %v857
        %v890 = vunpack.c.l.b16 %v858
        %v891 = vpack.c.b16 %v876, %v875
        %v892 = vpack.c.b16 %v878, %v877
        %v893 = vpack.c.b16 %v880, %v879
        %v894 = vpack.c.b16 %v882, %v881
        %v895 = vpack.c.b16 %v884, %v883
        %v896 = vpack.c.b16 %v886, %v885
        %v897 = vpack.c.b16 %v888, %v887
        %v898 = vpack.c.b16 %v890, %v889
        %907 = vmatprep.subr.bf16.mxu0 0
        %908 = vmatpush1.bf16.msra.mxu0 %v898
        %909 = vmatprep.subr.bf16.mxu0 0
        %910 = vmatpush1.bf16.msra.mxu0 %v897
        %911 = vmatprep.subr.bf16.mxu0 0
        %912 = vmatpush1.bf16.msra.mxu0 %v896
        %913 = vmatprep.subr.bf16.mxu0 0
        %914 = vmatpush1.bf16.msra.mxu0 %v895
        %915 = vmatprep.subr.bf16.mxu0 0
        %916 = vmatpush1.bf16.msra.mxu0 %v894
        %917 = vmatprep.subr.bf16.mxu0 0
        %918 = vmatpush1.bf16.msra.mxu0 %v893
        %919 = vmatprep.subr.bf16.mxu0 0
        %920 = vmatpush1.bf16.msra.mxu0 %v892
        %921 = vmatprep.subr.bf16.mxu0 0
        %922 = vmatpush1.bf16.msra.mxu0 %v891
        %923 = vmatprep.subr.bf16.mxu0 0
        %924 = vmatpush2.bf16.msra.mxu0 0
        %925 = vmatprep.subr.bf16.mxu0 0
        %926 = vmatpush2.bf16.msra.mxu0 0
        %927 = vmatprep.subr.bf16.mxu0 0
        %928 = vmatpush2.bf16.msra.mxu0 0
        %929 = vmatprep.subr.bf16.mxu0 0
        %930 = vmatpush2.bf16.msra.mxu0 0
        %931 = vmatprep.subr.bf16.mxu0 0
        %932 = vmatpush2.bf16.msra.mxu0 0
        %933 = vmatprep.subr.bf16.mxu0 0
        %934 = vmatpush2.bf16.msra.mxu0 0
        %935 = vmatprep.subr.bf16.mxu0 0
        %936 = vmatpush2.bf16.msra.mxu0 0
        %937 = vmatprep.subr.bf16.mxu0 0
        %938 = vmatpush2.bf16.msra.mxu0 0
        %939 = vmatprep.mubr.bf16.mxu0 0
        %940 = vmatmul.mubr.bf16.gmra.mxu0 %v627
        %v941 = vpop.f32.mrf.mxu0
        %v942 = vadd.f32 0.0, %v941
        %v943 = vpop.f32.mrf.mxu0
        %v944 = vpop.f32.mrf.mxu0
        %v945 = vpop.f32.mrf.mxu0
        %946 = vdwg.mxu0
        %v947 = vadd.f32 %v842, %v942
        %948 = vst [vmem:[#allocation4] sm:$0xff] %v947
        // Predicated region
        $region85: #{tpu_custom_call.1} parent=51 // pred_check
          %p949 = pneg %p615
        $region86: #{tpu_custom_call.1} parent=51 // pred_check_branch
          %951 = sbr.rel (%p949) target = $region88
        $region87: #{tpu_custom_call.1} parent=51 // pred_region
          %v952 = vld [vmem:[%s613] sm:$0xff]
          %v953 = vld [vmem:[#allocation16] sm:$0xff]
          %v954 = vld [vmem:[#allocation2] sm:$0xff]
          %955 = vrot.lane.b32.xlu0 %v954, 64
          %v956 = vpop.permute.xlu0 %955
          %v957 = vmul.f32 %v954, %v952
          %v958 = vmul.f32 %v956, %v953
          %v959 = vadd.f32 %v957, %v958
          %v960 = vpack.c.bf16 %v959, %v959
          %961 = vst [vmem:[%s592] sm:$0xf] %v960
          %v962 = vld [vmem:[#allocation3] sm:$0xff]
          %963 = vrot.lane.b32.xlu0 %v962, 64
          %v964 = vpop.permute.xlu0 %963
          %v965 = vmul.f32 %v962, %v952
          %v966 = vmul.f32 %v964, %v953
          %v967 = vadd.f32 %v965, %v966
          %v968 = vpack.c.bf16 %v967, %v967
          %969 = vst [vmem:[%s599] sm:$0xf] %v968
          %v970 = vld [vmem:[#allocation4] sm:$0xff]
          %971 = vrot.lane.b32.xlu0 %v970, 64
          %v972 = vpop.permute.xlu0 %971
          %v973 = vmul.f32 %v970, %v952
          %v974 = vmul.f32 %v972, %v953
          %v975 = vadd.f32 %v973, %v974
          %v976 = vpack.c.bf16 %v975, %v975
          %977 = vst [vmem:[%s606] sm:$0xf] %v976
        $region88: #{tpu_custom_call.1} parent=51 // pred_fallthru
          _
        %s978 = sand.u32 %s285, 1
        %s979 = scalar_lea.sflag [#allocation7], %s978
        %s980 = sand.u32 %s285, 1
        %s981 = smul.addr %s980, 4
        %s982 = scalar_lea.vmem [#allocation17], %s981
        %s983 = sand.u32 %s36, 1
        %s984 = scalar_lea.sflag [#allocation19], %s983
        %s985 = sand.u32 %s313, 1
        %s986 = smul.addr %s985, 4
        %s987 = scalar_lea.vmem [#allocation18], %s986
        %s988 = sand.u32 %s36, 1
        %s989 = scalar_lea.sflag [#allocation19], %s988
        %s990 = sand.u32 %s341, 1
        %s991 = smul.addr %s990, 4
        %s992 = scalar_lea.vmem [#allocation20], %s991
        // Predicated region
        $region89: #{tpu_custom_call.1} parent=51 // pred_check
          %p993 = pneg %p295
        $region90: #{tpu_custom_call.1} parent=51 // pred_check_branch
          %995 = sbr.rel (%p993) target = $region92
        $region91: #{tpu_custom_call.1} parent=51 // pred_region
          %s997 = ssub.s32 64, 64
          %998 = vsyncadd %s979, %s997
          %s999 = sadd.s32 %s42, %s41
          %s1000 = smul.addr %s999, 64
          %s1001 = scalar_lea.hbm %s8, %s1000
          %s1003 = sshll.u32 %s982, 4
          %s1004 = int_to_ptr.vmem [resolvable:$true] %s1003
          %1006 = dma.vmem_to_hbm [thread:$0]  %s1004, 64, %s1001, %s979
        $region92: #{tpu_custom_call.1} parent=51 // pred_fallthru
          _
        // Predicated region
        $region93: #{tpu_custom_call.1} parent=51 // pred_check
          %p1007 = pneg %p323
        $region94: #{tpu_custom_call.1} parent=51 // pred_check_branch
          %1009 = sbr.rel (%p1007) target = $region96
        $region95: #{tpu_custom_call.1} parent=51 // pred_region
          %s1011 = ssub.s32 64, 64
          %1012 = vsyncadd %s984, %s1011
          %s1013 = sadd.s32 %s42, %s41
          %s1014 = smul.addr %s1013, 64
          %s1015 = scalar_lea.hbm %s9, %s1014
          %s1017 = sshll.u32 %s987, 4
          %s1018 = int_to_ptr.vmem [resolvable:$true] %s1017
          %1020 = dma.vmem_to_hbm [thread:$0]  %s1018, 64, %s1015, %s984
        $region96: #{tpu_custom_call.1} parent=51 // pred_fallthru
          _
        // Predicated region
        $region97: #{tpu_custom_call.1} parent=51 // pred_check
          %p1021 = pneg %p351
        $region98: #{tpu_custom_call.1} parent=51 // pred_check_branch
          %1023 = sbr.rel (%p1021) target = $region100
        $region99: #{tpu_custom_call.1} parent=51 // pred_region
          %s1025 = ssub.s32 64, 64
          %1026 = vsyncadd %s989, %s1025
          %s1027 = sadd.s32 %s42, %s41
          %s1028 = smul.addr %s1027, 64
          %s1029 = scalar_lea.hbm %s10, %s1028
          %s1031 = sshll.u32 %s992, 4
          %s1032 = int_to_ptr.vmem [resolvable:$true] %s1031
          %1034 = dma.vmem_to_hbm [thread:$0]  %s1032, 64, %s1029, %s989
        $region100: #{tpu_custom_call.1} parent=51 // pred_fallthru
          _
      $region52: #{tpu_custom_call.1} parent=5 // pred_fallthru
        _
      %p1035 = scmp.le.s32.totalorder 2, %s31
      // Predicated region
      $region101: #{tpu_custom_call.1} parent=5 // pred_check
        %p1036 = pneg %p1035
      $region102: #{tpu_custom_call.1} parent=5 // pred_check_branch
        %1038 = sbr.rel (%p1036) target = $region104
      $region103: #{tpu_custom_call.1} parent=5 // pred_region
        %s1039 = ssub.s32 %s31, 2
        // Predicated region
        $region105: #{tpu_custom_call.1} parent=103 // pred_check
          %p1040 = pneg %p301
        $region106: #{tpu_custom_call.1} parent=103 // pred_check_branch
          %1042 = sbr.rel (%p1040) target = $region108
        $region107: #{tpu_custom_call.1} parent=103 // pred_region
          %s1043 = sand.u32 %s286, 1
          %s1044 = scalar_lea.sflag [#allocation7], %s1043
          %s1045 = sand.u32 %s286, 1
          %s1046 = smul.addr %s1045, 4
          %s1047 = scalar_lea.vmem [#allocation17], %s1046
          %1048 = dma.done %s1044, 64
        $region108: #{tpu_custom_call.1} parent=103 // pred_fallthru
          _
        // Predicated region
        $region109: #{tpu_custom_call.1} parent=103 // pred_check
          %p1049 = pneg %p329
        $region110: #{tpu_custom_call.1} parent=103 // pred_check_branch
          %1051 = sbr.rel (%p1049) target = $region112
        $region111: #{tpu_custom_call.1} parent=103 // pred_region
          %s1052 = sand.u32 %s37, 1
          %s1053 = scalar_lea.sflag [#allocation19], %s1052
          %s1054 = sand.u32 %s314, 1
          %s1055 = smul.addr %s1054, 4
          %s1056 = scalar_lea.vmem [#allocation18], %s1055
          %1057 = dma.done %s1053, 64
        $region112: #{tpu_custom_call.1} parent=103 // pred_fallthru
          _
        // Predicated region
        $region113: #{tpu_custom_call.1} parent=103 // pred_check
          %p1058 = pneg %p357
        $region114: #{tpu_custom_call.1} parent=103 // pred_check_branch
          %1060 = sbr.rel (%p1058) target = $region116
        $region115: #{tpu_custom_call.1} parent=103 // pred_region
          %s1061 = sand.u32 %s37, 1
          %s1062 = scalar_lea.sflag [#allocation19], %s1061
          %s1063 = sand.u32 %s342, 1
          %s1064 = smul.addr %s1063, 4
          %s1065 = scalar_lea.vmem [#allocation20], %s1064
          %1066 = dma.done %s1062, 64
        $region116: #{tpu_custom_call.1} parent=103 // pred_fallthru
          _
      $region104: #{tpu_custom_call.1} parent=5 // pred_fallthru
        _
    $region6: #{tpu_custom_call.1} parent=1 // loop_footer
      %s35 = sadd.s32 1, %s31
    $region7: #{tpu_custom_call.1} parent=1 // loop_footer_branch
      %30 = sbr.rel target = $region3
    $region8: #{tpu_custom_call.1} parent=1 // loop_exit
      _
    %1067 = vsyncpa [#allocation6], 1
    %s1068 = scalar_lea.sflag [#allocation6], 1
    %1069 = vsyncpa %s1068, 1
    %1070 = vsyncpa [#allocation9], 1
    %s1071 = scalar_lea.sflag [#allocation9], 1
    %1072 = vsyncpa %s1071, 1
    %1073 = vsyncpa [#allocation12], 1
    %1074 = vsyncpa [#allocation15], 1
    %1075 = vsyncpa [#allocation7], 1
    %s1076 = scalar_lea.sflag [#allocation7], 1
    %1077 = vsyncpa %s1076, 1
    %1078 = vsyncpa [#allocation19], 1
    %s1079 = scalar_lea.sflag [#allocation19], 1
    %1080 = vsyncpa %s1079, 1

</llo_original>
